<compile_context>
chip_gen: v7x
topology: tpu7x:2x2x1
jax: 0.10.0
libtpu: 0.0.40
codegen_flags: <defaults>
</compile_context>

<pallas_src>
import jax
import jax.numpy as jnp
from jax.experimental import pallas as pl
from jax.experimental.pallas import tpu as pltpu

LANE = 128
WIDE_LANES = 1024          # lane-dense slab width for large tensors
MAX_BLOCK_ROWS = 512       # 512 x 1024 x 4B = 2 MiB per f32 block


def _sublane_for(dtype) -> int:
    # 8 sublanes for 32-bit, 16 for 16-bit, 32 for 8-bit packing.
    return max(8, 32 // jnp.dtype(dtype).itemsize)


def _plan(n: int, sublane: int):
    """Pick (rows, width, block_rows) for a lane-dense 2D slab of n elements."""
    width = WIDE_LANES if n >= sublane * WIDE_LANES else LANE
    rows = -(-n // width)                       # ceil
    rows = -(-rows // sublane) * sublane        # round rows to sublane multiple
    block_rows = min(rows, MAX_BLOCK_ROWS)      # MAX_BLOCK_ROWS % 32 == 0
    rows = -(-rows // block_rows) * block_rows  # rows a multiple of block_rows
    return rows, width, block_rows


def _ode_kernel_dense(y_ref, g_ref, o_ref):
    """Per-element gamma: all three arrays streamed through VMEM."""
    y = y_ref[...]
    s = jnp.sin(y + g_ref[...])
    o_ref[...] = s * s - y


def _ode_kernel_scalar(gamma_ref, y_ref, o_ref):
    """Scalar gamma held in SMEM (scalar prefetch); broadcast on the VPU."""
    y = y_ref[...]
    s = jnp.sin(y + gamma_ref[0])
    o_ref[...] = s * s - y


def neural_ode_forward(t, y, gamma):
    """dydt = -y + sin(y + gamma)**2, computed by a Pallas TPU kernel.

    t is accepted for API parity with the PyTorch module but unused.
    y: float array of any shape (NCHW feature map in the model).
    gamma: scalar or broadcast-compatible array (pinned to y.dtype).
    """
    del t  # unused, matches PyTorch forward signature
    orig_shape = y.shape
    dtype = y.dtype
    n = y.size

    gamma = jnp.asarray(gamma, dtype=dtype)

    sublane = _sublane_for(dtype)
    rows, width, block_rows = _plan(n, sublane)
    n_pad = rows * width

    def to_slab(x):
        flat = x.reshape(-1)
        if n_pad != n:                         # skip the copy when already tileable
            flat = jnp.pad(flat, (0, n_pad - n))
        return flat.reshape(rows, width)

    y2d = to_slab(y)

    grid = (rows // block_rows,)
    block = (block_rows, width)
    cparams = pltpu.CompilerParams(
        dimension_semantics=("parallel",),
        vmem_limit_bytes=32 * 1024 * 1024,
    )
    out_shape = jax.ShapeDtypeStruct((rows, width), dtype)

    if gamma.size == 1:
        # Scalar gamma: SMEM scalar prefetch, no full-size HBM broadcast.
        out2d = pl.pallas_call(
            _ode_kernel_scalar,
            out_shape=out_shape,
            grid_spec=pltpu.PrefetchScalarGridSpec(
                num_scalar_prefetch=1,
                grid=grid,
                in_specs=[pl.BlockSpec(block, lambda i, g: (i, 0))],
                out_specs=pl.BlockSpec(block, lambda i, g: (i, 0)),
            ),
            compiler_params=cparams,
        )(gamma.reshape(1), y2d)
    else:
        # Per-element (or low-rank) gamma: broadcast (no-op if same shape) and stream.
        g2d = to_slab(jnp.broadcast_to(gamma, orig_shape))
        out2d = pl.pallas_call(
            _ode_kernel_dense,
            out_shape=out_shape,
            grid_spec=pltpu.PrefetchScalarGridSpec(
                num_scalar_prefetch=0,
                grid=grid,
                in_specs=[
                    pl.BlockSpec(block, lambda i: (i, 0)),
                    pl.BlockSpec(block, lambda i: (i, 0)),
                ],
                out_specs=pl.BlockSpec(block, lambda i: (i, 0)),
            ),
            compiler_params=cparams,
        )(y2d, g2d)

    out_flat = out2d.reshape(-1)
    if n_pad != n:                             # skip the slice when no padding was added
        out_flat = out_flat[:n]
    return out_flat.reshape(orig_shape)


def _reference(t, y, gamma):
    del t
    return -y + jnp.sin(y + gamma) ** 2


if __name__ == "__main__":
    key = jax.random.PRNGKey(0)
    k1, k2 = jax.random.split(key)

    # Small NCHW input, consistent with the feature-map usage in the model.
    B, C, H, W = 2, 4, 16, 16
    y = jax.random.normal(k1, (B, C, H, W), dtype=jnp.float32)
    gamma = jax.random.normal(k2, (B, C, H, W), dtype=jnp.float32)
    t = jnp.float32(0.0)  # unused by the forward

    # Per-element gamma path.
    out = jax.block_until_ready(neural_ode_forward(t, y, gamma))
    ref = _reference(t, y, gamma)
    assert out.shape == y.shape
    assert jnp.allclose(out, ref, atol=1e-5, rtol=1e-5), "dense-gamma mismatch"

    # Scalar gamma path (gamma set via fresh(scalar)): SMEM scalar prefetch.
    gamma_s = jnp.float32(0.3)
    out_s = jax.block_until_ready(neural_ode_forward(t, y, gamma_s))
    ref_s = _reference(t, y, gamma_s)
    assert jnp.allclose(out_s, ref_s, atol=1e-5, rtol=1e-5), "scalar-gamma mismatch"

    print("KERNEL_OK")
</pallas_src>

<mosaic_0001>
module attributes {stable_mosaic.version = 11 : i64} {
  func.func @_ode_kernel_dense(%arg0: i32, %arg1: memref<16x128xf32, #tpu.memory_space<vmem>>, %arg2: memref<16x128xf32, #tpu.memory_space<vmem>>, %arg3: memref<16x128xf32, #tpu.memory_space<vmem>>) attributes {dimension_semantics = [#tpu.dimension_semantics<parallel>], iteration_bounds = array<i64: 1>, scalar_prefetch = 0 : i64, scratch_operands = 0 : i64, tpu.core_type = #tpu.core_type<tc>, window_params = [{transform_indices = @transform_0, window_bounds = array<i64: 16, 128>}, {transform_indices = @transform_1, window_bounds = array<i64: 16, 128>}, {transform_indices = @transform_2, window_bounds = array<i64: 16, 128>}]} {
    %c0 = arith.constant 0 : index
    %c0_0 = arith.constant 0 : index
    %0 = vector.load %arg1[%c0, %c0_0] : memref<16x128xf32, #tpu.memory_space<vmem>>, vector<16x128xf32>
    %c0_1 = arith.constant 0 : index
    %c0_2 = arith.constant 0 : index
    %1 = vector.load %arg2[%c0_1, %c0_2] : memref<16x128xf32, #tpu.memory_space<vmem>>, vector<16x128xf32>
    %2 = arith.addf %0, %1 : vector<16x128xf32>
    %3 = math.sin %2 : vector<16x128xf32>
    %4 = arith.mulf %3, %3 : vector<16x128xf32>
    %5 = arith.subf %4, %0 : vector<16x128xf32>
    %c0_3 = arith.constant 0 : index
    %c0_4 = arith.constant 0 : index
    %6 = vector.load %arg3[%c0_3, %c0_4] : memref<16x128xf32, #tpu.memory_space<vmem>>, vector<16x128xf32>
    tpu.vector_store %arg3[%c0_3, %c0_4], %5 {strides = array<i32>} : memref<16x128xf32, #tpu.memory_space<vmem>>, vector<16x128xf32>,
    return
  }
  func.func @transform_0(%arg0: i32) -> (i32, i32) {
    %c0_i32 = arith.constant 0 : i32
    %c0_i32_0 = arith.constant 0 : i32
    return %arg0, %c0_i32 : i32, i32
  }
  func.func @transform_1(%arg0: i32) -> (i32, i32) {
    %c0_i32 = arith.constant 0 : i32
    %c0_i32_0 = arith.constant 0 : i32
    return %arg0, %c0_i32 : i32, i32
  }
  func.func @transform_2(%arg0: i32) -> (i32, i32) {
    %c0_i32 = arith.constant 0 : i32
    %c0_i32_0 = arith.constant 0 : i32
    return %arg0, %c0_i32 : i32, i32
  }
}

</mosaic_0001>

<llo_original>
// kernel: tpu_custom_call.1
$region0: #{tpu_custom_call.1}
  #allocation0 [shape = 'u32[]', space=smem, size = 0x4, offset = 0x4, fixed_abs, tag = 'smem constant byte address 0x4 - core index']
  #allocation1 [shape = 'u32[144,128]{1,0:T(1,128)}', space=vmem, size = 0x12000, scoped, tag = 'internal scratch']
  %s0 = inlined_call_operand.hbm [shape: f32[16,128], index: 0, kind: input, shape index: {}]
  %s1 = inlined_call_operand.hbm [shape: f32[16,128], index: 1, kind: input, shape index: {}]
  %s2 = inlined_call_operand.hbm [shape: f32[16,128], index: 2, kind: output, shape index: {}]
  %s3 = sld [smem:[#allocation0]]
  $region26: #{tpu_custom_call.1} parent=0
    _
  %s5 = ssub.s32 1, %s3
  %s6 = scalar_select 0, %s5, %s3
  $region1: #{tpu_custom_call.1} parent=0
    #allocation2 [shape = 'u8[8192]{0}', space=vmem, size = 0x2000, scoped, tag = 'input window, operand 0, single buffered']
    #allocation3 [shape = 's32[1]{0}', space=sflag, size = 0x4, scoped, tag = 'scoped memory for tpu_custom_call.1']
    #allocation4 [shape = 's32[1]{0}', space=sflag, size = 0x4, scoped, tag = 'scoped memory for tpu_custom_call.1']
    #allocation5 [shape = 'u8[8192]{0}', space=vmem, size = 0x2000, scoped, tag = 'input window, operand 1, single buffered']
    #allocation6 [shape = 's32[1]{0}', space=sflag, size = 0x4, scoped, tag = 'scoped memory for tpu_custom_call.1']
    #allocation7 [shape = 'u8[8192]{0}', space=vmem, size = 0x2000, scoped, tag = 'output window, operand 0, single buffered']
    %7 = vsyncpa [#allocation3], 0
    %8 = vsyncpa [#allocation6], 0
    %9 = vsyncpa [#allocation4], 0
    // Predicated region
    $region2: #{tpu_custom_call.1} parent=1 // pred_check
      _
    $region3: #{tpu_custom_call.1} parent=1 // pred_check_branch
      %11 = sbr.rel (0) target = $region5
    $region4: #{tpu_custom_call.1} parent=1 // pred_region
      %s13 = ssub.s32 256, 256
      %14 = vsyncadd [#allocation3], %s13
      %s15 = sshll.u32 [#allocation2], 4
      %s16 = int_to_ptr.vmem [resolvable:$true] %s15
      %21 = dma.hbm_to_vmem [thread:$0]  %s0, 256, %s16, [#allocation3], 128, 128, 8
    $region5: #{tpu_custom_call.1} parent=1 // pred_fallthru
      _
    // Predicated region
    $region6: #{tpu_custom_call.1} parent=1 // pred_check
      _
    $region7: #{tpu_custom_call.1} parent=1 // pred_check_branch
      %23 = sbr.rel (0) target = $region9
    $region8: #{tpu_custom_call.1} parent=1 // pred_region
      %s25 = ssub.s32 256, 256
      %26 = vsyncadd [#allocation6], %s25
      %s27 = sshll.u32 [#allocation5], 4
      %s28 = int_to_ptr.vmem [resolvable:$true] %s27
      %33 = dma.hbm_to_vmem [thread:$0]  %s1, 256, %s28, [#allocation6], 128, 128, 8
    $region9: #{tpu_custom_call.1} parent=1 // pred_fallthru
      _
    // Predicated region
    $region10: #{tpu_custom_call.1} parent=1 // pred_check
      _
    $region11: #{tpu_custom_call.1} parent=1 // pred_check_branch
      %35 = sbr.rel (0) target = $region13
    $region12: #{tpu_custom_call.1} parent=1 // pred_region
      %36 = dma.done [#allocation3], 256
    $region13: #{tpu_custom_call.1} parent=1 // pred_fallthru
      _
    // Predicated region
    $region14: #{tpu_custom_call.1} parent=1 // pred_check
      _
    $region15: #{tpu_custom_call.1} parent=1 // pred_check_branch
      %38 = sbr.rel (0) target = $region17
    $region16: #{tpu_custom_call.1} parent=1 // pred_region
      %39 = dma.done [#allocation6], 256
    $region17: #{tpu_custom_call.1} parent=1 // pred_fallthru
      _
    %v40 = vld [vmem:[#allocation2] sm:$0xff]
    %v41 = vld [vmem:[#allocation2 + $0x8] sm:$0xff]
    %v42 = vld [vmem:[#allocation5] sm:$0xff]
    %v43 = vld [vmem:[#allocation5 + $0x8] sm:$0xff]
    %v44 = vadd.f32 %v40, %v42
    %v45 = vadd.f32 %v41, %v43
    %v46 = vand.u32 2147483647, %v44
    %vm47 = vcmp.le.f32.partialorder %v46, 0.7853982
    %vm48 = vcmp.lt.s32.totalorder %v44, 0
    %v49 = vand.u32 %v44, 2139095040
    %v50 = vshrl.u32 %v49, 23
    %v51 = vsub.s32 %v50, 127
    %v52 = vand.u32 2147483647, %v44
    %v53 = vand.u32 %v52, 8388607
    %v54 = vor.u32 %v53, 8388608
    %v55 = vsub.s32 0, %v54
    %v56 = vadd.s32 %v51, 1
    %vm57 = vcmp.gt.s32.totalorder %v56, 0
    %v58 = vsel %vm57, %v56, 0
    %v59 = vshrl.u32 %v58, 5
    %v60 = vand.u32 %v58, 31
    %v61 = vsub.s32 32, %v60
    %v62 = vshrl.u32 683565275, %v61
    %v63 = vshll.u32 683565275, %v60
    %v64 = vshrl.u32 2475754826, %v61
    %v65 = vor.u32 %v63, %v64
    %v66 = vshll.u32 2475754826, %v60
    %v67 = vshrl.u32 2131351028, %v61
    %v68 = vor.u32 %v66, %v67
    %v69 = vshll.u32 2131351028, %v60
    %v70 = vshrl.u32 2102212464, %v61
    %v71 = vor.u32 %v69, %v70
    %v72 = vshll.u32 2102212464, %v60
    %v73 = vshrl.u32 920167782, %v61
    %v74 = vor.u32 %v72, %v73
    %v75 = vshll.u32 920167782, %v60
    %v76 = vshrl.u32 1326507024, %v61
    %v77 = vor.u32 %v75, %v76
    %vm78 = vcmp.lt.s32.totalorder %v59, 1
    %vm79 = vcmp.lt.s32.totalorder %v59, 2
    %vm80 = vcmp.lt.s32.totalorder %v59, 3
    %vm81 = vcmp.lt.s32.totalorder %v59, 4
    %v82 = vsel %vm78, %v62, %v65
    %v83 = vsel %vm81, %v71, 2102212464
    %v84 = vsel %vm80, %v68, %v83
    %v85 = vsel %vm79, %v82, %v84
    %v86 = vsel %vm78, %v65, %v68
    %v87 = vsel %vm81, %v74, 920167782
    %v88 = vsel %vm80, %v71, %v87
    %v89 = vsel %vm79, %v86, %v88
    %v90 = vsel %vm78, %v68, %v71
    %v91 = vsel %vm81, %v77, 1326507024
    %v92 = vsel %vm80, %v74, %v91
    %v93 = vsel %vm79, %v90, %v92
    %v94 = vshll.u32 %v54, 8
    %v95 = vmul.u32.u64.compose %v94, %v93
    %v96 = vextract.low.u32 %v95
    %v97 = vextract.high.u32 %v95
    %v98 = vmul.u32.u64.compose %v94, %v89
    %v99 = vextract.low.u32 %v98
    %v100 = vextract.high.u32 %v98
    %v101 = vmul.u32 %v94, %v85
    %v102 = vadd.s32 %v97, %v99
    %vm103 = vc.u32 %v97, %v99
    %v104 = vadd.s32 %v100, 1
    %v105 = vsel %vm103, %v104, %v100
    %v106 = vadd.s32 %v101, %v105
    %v107 = vadd.s32 %v106, 536870912
    %v108 = vshrl.u32 %v107, 30
    %v109 = vshll.u32 %v108, 30
    %v110 = vsub.s32 %v106, %v109
    %vm111 = vcmp.lt.s32.totalorder %v110, 0
    %v112 = vsub.s32 0, %v110
    %v113 = vsel %vm111, %v112, %v110
    %v114 = vclz %v113
    %v115 = vsub.s32 %v114, 2
    %vm116 = vcmp.gt.s32.totalorder 0, %v115
    %v117 = vsel %vm116, 0, %v115
    %v118 = vsub.s32 32, %v117
    %v119 = vshll.u32 %v110, %v117
    %v120 = vshrl.u32 %v102, %v118
    %v121 = vor.u32 %v119, %v120
    %v122 = vsub.s32 4294967266, %v117
    %v123 = vadd.s32 %v122, 127
    %v124 = vshll.u32 %v123, 23
    %v125 = vor.u32 4788187, %v124
    %v126 = vand.u32 2147483647, %v125
    %v128 = vcvt.s32.f32 %v121
    %v129 = vmul.f32 %v128, %v126
    %v130 = vxor.u32 %v129, 2147483648
    %v131 = vsel %vm48, %v130, %v129
    %v132 = vsub.s32 4, %v108
    %v133 = vsel %vm48, %v132, %v108
    %v134 = vsel %vm47, %v44, %v131
    %v135 = vsel %vm47, 0, %v133
    %v136 = vcosq.f32.pop %v134
    %v137 = vsinq.f32.pop %v134
    %vm138 = vweird.f32 %v44
    %v139 = vadd.s32 %v135, 3
    %v140 = vand.u32 %v139, 3
    %vm141 = vcmp.lt.s32.totalorder %v140, 2
    %vm142 = vcmp.eq.s32.totalorder %v140, 0
    %v143 = vxor.u32 %v137, 2147483648
    %v144 = vsel %vm142, %v136, %v143
    %vm145 = vcmp.eq.s32.totalorder %v140, 2
    %v146 = vxor.u32 %v136, 2147483648
    %v147 = vsel %vm145, %v146, %v137
    %v148 = vsel %vm141, %v144, %v147
    %v149 = vsel %vm138, nan, %v148
    %v150 = vand.u32 2147483647, %v45
    %vm151 = vcmp.le.f32.partialorder %v150, 0.7853982
    %vm152 = vcmp.lt.s32.totalorder %v45, 0
    %v153 = vand.u32 %v45, 2139095040
    %v154 = vshrl.u32 %v153, 23
    %v155 = vsub.s32 %v154, 127
    %v156 = vand.u32 2147483647, %v45
    %v157 = vand.u32 %v156, 8388607
    %v158 = vor.u32 %v157, 8388608
    %v159 = vsub.s32 0, %v158
    %v160 = vadd.s32 %v155, 1
    %vm161 = vcmp.gt.s32.totalorder %v160, 0
    %v162 = vsel %vm161, %v160, 0
    %v163 = vshrl.u32 %v162, 5
    %v164 = vand.u32 %v162, 31
    %v165 = vsub.s32 32, %v164
    %v166 = vshrl.u32 683565275, %v165
    %v167 = vshll.u32 683565275, %v164
    %v168 = vshrl.u32 2475754826, %v165
    %v169 = vor.u32 %v167, %v168
    %v170 = vshll.u32 2475754826, %v164
    %v171 = vshrl.u32 2131351028, %v165
    %v172 = vor.u32 %v170, %v171
    %v173 = vshll.u32 2131351028, %v164
    %v174 = vshrl.u32 2102212464, %v165
    %v175 = vor.u32 %v173, %v174
    %v176 = vshll.u32 2102212464, %v164
    %v177 = vshrl.u32 920167782, %v165
    %v178 = vor.u32 %v176, %v177
    %v179 = vshll.u32 920167782, %v164
    %v180 = vshrl.u32 1326507024, %v165
    %v181 = vor.u32 %v179, %v180
    %vm182 = vcmp.lt.s32.totalorder %v163, 1
    %vm183 = vcmp.lt.s32.totalorder %v163, 2
    %vm184 = vcmp.lt.s32.totalorder %v163, 3
    %vm185 = vcmp.lt.s32.totalorder %v163, 4
    %v186 = vsel %vm182, %v166, %v169
    %v187 = vsel %vm185, %v175, 2102212464
    %v188 = vsel %vm184, %v172, %v187
    %v189 = vsel %vm183, %v186, %v188
    %v190 = vsel %vm182, %v169, %v172
    %v191 = vsel %vm185, %v178, 920167782
    %v192 = vsel %vm184, %v175, %v191
    %v193 = vsel %vm183, %v190, %v192
    %v194 = vsel %vm182, %v172, %v175
    %v195 = vsel %vm185, %v181, 1326507024
    %v196 = vsel %vm184, %v178, %v195
    %v197 = vsel %vm183, %v194, %v196
    %v198 = vshll.u32 %v158, 8
    %v199 = vmul.u32.u64.compose %v198, %v197
    %v200 = vextract.low.u32 %v199
    %v201 = vextract.high.u32 %v199
    %v202 = vmul.u32.u64.compose %v198, %v193
    %v203 = vextract.low.u32 %v202
    %v204 = vextract.high.u32 %v202
    %v205 = vmul.u32 %v198, %v189
    %v206 = vadd.s32 %v201, %v203
    %vm207 = vc.u32 %v201, %v203
    %v208 = vadd.s32 %v204, 1
    %v209 = vsel %vm207, %v208, %v204
    %v210 = vadd.s32 %v205, %v209
    %v211 = vadd.s32 %v210, 536870912
    %v212 = vshrl.u32 %v211, 30
    %v213 = vshll.u32 %v212, 30
    %v214 = vsub.s32 %v210, %v213
    %vm215 = vcmp.lt.s32.totalorder %v214, 0
    %v216 = vsub.s32 0, %v214
    %v217 = vsel %vm215, %v216, %v214
    %v218 = vclz %v217
    %v219 = vsub.s32 %v218, 2
    %vm220 = vcmp.gt.s32.totalorder 0, %v219
    %v221 = vsel %vm220, 0, %v219
    %v222 = vsub.s32 32, %v221
    %v223 = vshll.u32 %v214, %v221
    %v224 = vshrl.u32 %v206, %v222
    %v225 = vor.u32 %v223, %v224
    %v226 = vsub.s32 4294967266, %v221
    %v227 = vadd.s32 %v226, 127
    %v228 = vshll.u32 %v227, 23
    %v229 = vor.u32 4788187, %v228
    %v230 = vand.u32 2147483647, %v229
    %v232 = vcvt.s32.f32 %v225
    %v233 = vmul.f32 %v232, %v230
    %v234 = vxor.u32 %v233, 2147483648
    %v235 = vsel %vm152, %v234, %v233
    %v236 = vsub.s32 4, %v212
    %v237 = vsel %vm152, %v236, %v212
    %v238 = vsel %vm151, %v45, %v235
    %v239 = vsel %vm151, 0, %v237
    %v240 = vcosq.f32.pop %v238
    %v241 = vsinq.f32.pop %v238
    %vm242 = vweird.f32 %v45
    %v243 = vadd.s32 %v239, 3
    %v244 = vand.u32 %v243, 3
    %vm245 = vcmp.lt.s32.totalorder %v244, 2
    %vm246 = vcmp.eq.s32.totalorder %v244, 0
    %v247 = vxor.u32 %v241, 2147483648
    %v248 = vsel %vm246, %v240, %v247
    %vm249 = vcmp.eq.s32.totalorder %v244, 2
    %v250 = vxor.u32 %v240, 2147483648
    %v251 = vsel %vm249, %v250, %v241
    %v252 = vsel %vm245, %v248, %v251
    %v253 = vsel %vm242, nan, %v252
    %v254 = vmul.f32 %v149, %v149
    %v255 = vmul.f32 %v253, %v253
    %v256 = vsub.f32 %v254, %v40
    %v257 = vsub.f32 %v255, %v41
    %258 = vst [vmem:[#allocation7] sm:$0xff] %v256
    %259 = vst [vmem:[#allocation7 + $0x8] sm:$0xff] %v257
    // Predicated region
    $region18: #{tpu_custom_call.1} parent=1 // pred_check
      _
    $region19: #{tpu_custom_call.1} parent=1 // pred_check_branch
      %261 = sbr.rel (0) target = $region21
    $region20: #{tpu_custom_call.1} parent=1 // pred_region
      %s263 = ssub.s32 256, 256
      %264 = vsyncadd [#allocation4], %s263
      %s265 = sshll.u32 [#allocation7], 4
      %s266 = int_to_ptr.vmem [resolvable:$true] %s265
      %271 = dma.vmem_to_hbm [thread:$0]  %s266, 256, %s2, [#allocation4], 128, 128, 8
    $region21: #{tpu_custom_call.1} parent=1 // pred_fallthru
      _
    // Predicated region
    $region22: #{tpu_custom_call.1} parent=1 // pred_check
      _
    $region23: #{tpu_custom_call.1} parent=1 // pred_check_branch
      %273 = sbr.rel (0) target = $region25
    $region24: #{tpu_custom_call.1} parent=1 // pred_region
      %274 = dma.done [#allocation4], 256
    $region25: #{tpu_custom_call.1} parent=1 // pred_fallthru
      _
    %275 = vsyncpa [#allocation3], 1
    %276 = vsyncpa [#allocation6], 1
    %277 = vsyncpa [#allocation4], 1

</llo_original>
